<compile_context>
chip_gen: v5e
topology: v5e:2x2
jax: 0.10.0
libtpu: 0.0.40
codegen_flags: <defaults>
</compile_context>

<pallas_src>
import math

import jax
import jax.numpy as jnp
from jax import lax
from jax.experimental import pallas as pl
from jax.experimental.pallas import tpu as pltpu

_LN_EPS = 1e-5  # torch.nn.LayerNorm default


def _decoupled_q_kernel(x_ref, w_in_ref, b_in_ref,
                        w1_ref, b1_ref, w2_ref, b2_ref,
                        gamma_ref, beta_ref,
                        wh_ref, bh_ref, o_ref):
    f32 = jnp.float32
    mxu_dtype = w_in_ref.dtype  # bf16 on v6e/v7x path, f32 otherwise

    # ---- input layer: (B, S) @ (S, H) + (1, H) ------------------------------
    h = jnp.dot(x_ref[...], w_in_ref[...], preferred_element_type=f32) + b_in_ref[...]

    # ---- MLP residual block (fc1 -> relu -> fc2 -> relu, + residual) --------
    residual = h
    a = jnp.dot(h.astype(mxu_dtype), w1_ref[...], preferred_element_type=f32) + b1_ref[...]
    a = jnp.maximum(a, 0.0)
    a = jnp.dot(a.astype(mxu_dtype), w2_ref[...], preferred_element_type=f32) + b2_ref[...]
    a = jnp.maximum(a, 0.0)
    h = residual + a

    # ---- LayerNorm over the feature axis (f32 epilogue, EUP rsqrt) ----------
    mean = jnp.mean(h, axis=-1, keepdims=True)
    centered = h - mean
    var = jnp.mean(centered * centered, axis=-1, keepdims=True)
    h = centered * lax.rsqrt(var + _LN_EPS) * gamma_ref[...] + beta_ref[...]

    # ---- all heads fused into one lane-dense matmul --------------------------
    # (B, H) @ (H, heads*actions) + (1, heads*actions)
    out = jnp.dot(h.astype(mxu_dtype), wh_ref[...], preferred_element_type=f32) + bh_ref[...]
    o_ref[...] = out.astype(o_ref.dtype)


def decoupled_q_forward(x, params, *, num_heads, num_actions,
                        mxu_dtype=jnp.float32):
    """x: (B, state_dim) -> (B, num_heads, num_actions)."""
    B, _ = x.shape
    H = params["w_in"].shape[1]
    E, A = num_heads, num_actions

    # Fold heads into the lane axis: W_heads (E, H, A) -> (H, E*A), bias (E,1,A) -> (1, E*A).
    # out_flat[b, e*A + a] == (h @ W_heads[e] + b_heads[e])[b, a], i.e. exactly
    # vals.transpose(0, 1) after the final reshape.
    wh = jnp.transpose(params["w_heads"], (1, 0, 2)).reshape(H, E * A)
    bh = params["b_heads"].reshape(1, E * A)

    cast = lambda a: a.astype(mxu_dtype)                 # MXU operands only
    row = lambda a: a.reshape(1, -1).astype(jnp.float32)  # f32 epilogue params

    args = (
        cast(x),
        cast(params["w_in"]), row(params["b_in"]),
        cast(params["w1"]), row(params["b1"]),
        cast(params["w2"]), row(params["b2"]),
        row(params["gamma"]), row(params["beta"]),
        cast(wh), bh.astype(jnp.float32),
    )

    vmem_spec = pl.BlockSpec(memory_space=pltpu.MemorySpace.VMEM)
    out_flat = pl.pallas_call(
        _decoupled_q_kernel,
        out_shape=jax.ShapeDtypeStruct((B, E * A), jnp.float32),
        in_specs=[vmem_spec] * len(args),
        out_specs=vmem_spec,
    )(*args)
    return out_flat.reshape(B, E, A)


def _reference_forward(x, p, num_heads):
    """Plain-JAX reference mirroring the PyTorch module."""
    h = x @ p["w_in"] + p["b_in"]
    residual = h
    a = jax.nn.relu(h @ p["w1"] + p["b1"])
    a = jax.nn.relu(a @ p["w2"] + p["b2"])
    h = residual + a
    mean = h.mean(-1, keepdims=True)
    var = ((h - mean) ** 2).mean(-1, keepdims=True)
    h = (h - mean) / jnp.sqrt(var + _LN_EPS) * p["gamma"] + p["beta"]
    xh = jnp.broadcast_to(h[None], (num_heads,) + h.shape)
    out = jnp.einsum("ebh,eha->eba", xh, p["w_heads"]) + p["b_heads"]
    return jnp.transpose(out, (1, 0, 2))


def _init_params(key, state_dim, hidden_dim, num_actions, num_heads):
    keys = jax.random.split(key, 8)

    def lin(kw, kb, fan_in, shape_w, shape_b):
        k = 1.0 / math.sqrt(fan_in)
        w = jax.random.uniform(kw, shape_w, minval=-k, maxval=k, dtype=jnp.float32)
        b = jax.random.uniform(kb, shape_b, minval=-k, maxval=k, dtype=jnp.float32)
        return w, b

    w_in, b_in = lin(keys[0], keys[1], state_dim, (state_dim, hidden_dim), (hidden_dim,))
    w1, b1 = lin(keys[2], keys[3], hidden_dim, (hidden_dim, hidden_dim), (hidden_dim,))
    w2, b2 = lin(keys[4], keys[5], hidden_dim, (hidden_dim, hidden_dim), (hidden_dim,))
    w_heads, b_heads = lin(keys[6], keys[7], hidden_dim,
                           (num_heads, hidden_dim, num_actions),
                           (num_heads, 1, num_actions))
    return dict(
        w_in=w_in, b_in=b_in, w1=w1, b1=b1, w2=w2, b2=b2,
        gamma=jnp.ones((hidden_dim,), jnp.float32),
        beta=jnp.zeros((hidden_dim,), jnp.float32),
        w_heads=w_heads, b_heads=b_heads,
    )


if __name__ == "__main__":
    state_dim, hidden_dim, num_actions, num_heads, batch = 32, 128, 32, 4, 8

    key = jax.random.PRNGKey(0)
    kp, kx = jax.random.split(key)
    params = _init_params(kp, state_dim, hidden_dim, num_actions, num_heads)
    x = jax.random.normal(kx, (batch, state_dim), dtype=jnp.float32)

    ref = _reference_forward(x, params, num_heads)

    # f32 MXU-operand path (tight check; safe default on v5e).
    out_f32 = jax.block_until_ready(
        decoupled_q_forward(x, params, num_heads=num_heads,
                            num_actions=num_actions, mxu_dtype=jnp.float32))
    assert out_f32.shape == (batch, num_heads, num_actions)
    assert jnp.allclose(out_f32, ref, atol=1e-4, rtol=1e-4)

    # bf16 MXU-operand path (preferred on v6e/v7x); f32 accumulation/epilogue.
    out_bf16 = jax.block_until_ready(
        decoupled_q_forward(x, params, num_heads=num_heads,
                            num_actions=num_actions, mxu_dtype=jnp.bfloat16))
    assert out_bf16.shape == (batch, num_heads, num_actions)
    assert jnp.allclose(out_bf16, ref, atol=1e-1, rtol=1e-1)

    print("KERNEL_OK")
</pallas_src>

<mosaic_0001>
module attributes {stable_mosaic.version = 11 : i64} {
  func.func @_decoupled_q_kernel(%arg0: memref<8x32xf32, #tpu.memory_space<vmem>>, %arg1: memref<32x128xf32, #tpu.memory_space<vmem>>, %arg2: memref<1x128xf32, #tpu.memory_space<vmem>>, %arg3: memref<128x128xf32, #tpu.memory_space<vmem>>, %arg4: memref<1x128xf32, #tpu.memory_space<vmem>>, %arg5: memref<128x128xf32, #tpu.memory_space<vmem>>, %arg6: memref<1x128xf32, #tpu.memory_space<vmem>>, %arg7: memref<1x128xf32, #tpu.memory_space<vmem>>, %arg8: memref<1x128xf32, #tpu.memory_space<vmem>>, %arg9: memref<128x128xf32, #tpu.memory_space<vmem>>, %arg10: memref<1x128xf32, #tpu.memory_space<vmem>>, %arg11: memref<8x128xf32, #tpu.memory_space<vmem>>) attributes {dimension_semantics = [], scalar_prefetch = 0 : i64, scratch_operands = 0 : i64, tpu.core_type = #tpu.core_type<tc>} {
    %c0 = arith.constant 0 : index
    %c0_0 = arith.constant 0 : index
    %0 = vector.load %arg0[%c0, %c0_0] : memref<8x32xf32, #tpu.memory_space<vmem>>, vector<8x32xf32>
    %c0_1 = arith.constant 0 : index
    %c0_2 = arith.constant 0 : index
    %1 = vector.load %arg1[%c0_1, %c0_2] : memref<32x128xf32, #tpu.memory_space<vmem>>, vector<32x128xf32>
    %cst = arith.constant dense<0.000000e+00> : vector<8x128xf32>
    %2 = tpu.matmul %0, %1, %cst {dimension_numbers = #tpu.dot_dimension_numbers<[1], [0], [0], [1], [0, 0, 1, 1], [], []>} : vector<8x32xf32>, vector<32x128xf32>, vector<8x128xf32> -> vector<8x128xf32>
    %c0_3 = arith.constant 0 : index
    %c0_4 = arith.constant 0 : index
    %3 = vector.load %arg2[%c0_3, %c0_4] : memref<1x128xf32, #tpu.memory_space<vmem>>, vector<1x128xf32>
    %4 = vector.broadcast %3 : vector<1x128xf32> to vector<8x128xf32>
    %5 = arith.addf %2, %4 : vector<8x128xf32>
    %c0_5 = arith.constant 0 : index
    %c0_6 = arith.constant 0 : index
    %6 = vector.load %arg3[%c0_5, %c0_6] : memref<128x128xf32, #tpu.memory_space<vmem>>, vector<128x128xf32>
    %cst_7 = arith.constant dense<0.000000e+00> : vector<8x128xf32>
    %7 = tpu.matmul %5, %6, %cst_7 {dimension_numbers = #tpu.dot_dimension_numbers<[1], [0], [0], [1], [0, 0, 1, 1], [], []>} : vector<8x128xf32>, vector<128x128xf32>, vector<8x128xf32> -> vector<8x128xf32>
    %c0_8 = arith.constant 0 : index
    %c0_9 = arith.constant 0 : index
    %8 = vector.load %arg4[%c0_8, %c0_9] : memref<1x128xf32, #tpu.memory_space<vmem>>, vector<1x128xf32>
    %9 = vector.broadcast %8 : vector<1x128xf32> to vector<8x128xf32>
    %10 = arith.addf %7, %9 : vector<8x128xf32>
    %cst_10 = arith.constant 0.000000e+00 : f32
    %11 = vector.broadcast %cst_10 : f32 to vector<8x128xf32>
    %12 = arith.maximumf %10, %11 : vector<8x128xf32>
    %c0_11 = arith.constant 0 : index
    %c0_12 = arith.constant 0 : index
    %13 = vector.load %arg5[%c0_11, %c0_12] : memref<128x128xf32, #tpu.memory_space<vmem>>, vector<128x128xf32>
    %cst_13 = arith.constant dense<0.000000e+00> : vector<8x128xf32>
    %14 = tpu.matmul %12, %13, %cst_13 {dimension_numbers = #tpu.dot_dimension_numbers<[1], [0], [0], [1], [0, 0, 1, 1], [], []>} : vector<8x128xf32>, vector<128x128xf32>, vector<8x128xf32> -> vector<8x128xf32>
    %c0_14 = arith.constant 0 : index
    %c0_15 = arith.constant 0 : index
    %15 = vector.load %arg6[%c0_14, %c0_15] : memref<1x128xf32, #tpu.memory_space<vmem>>, vector<1x128xf32>
    %16 = vector.broadcast %15 : vector<1x128xf32> to vector<8x128xf32>
    %17 = arith.addf %14, %16 : vector<8x128xf32>
    %cst_16 = arith.constant 0.000000e+00 : f32
    %18 = vector.broadcast %cst_16 : f32 to vector<8x128xf32>
    %19 = arith.maximumf %17, %18 : vector<8x128xf32>
    %20 = arith.addf %5, %19 : vector<8x128xf32>
    %cst_17 = arith.constant dense<0.000000e+00> : vector<8xf32>
    %21 = vector.multi_reduction <add>, %20, %cst_17 [1] : vector<8x128xf32> to vector<8xf32>
    %22 = vector.shape_cast %21 : vector<8xf32> to vector<8x1xf32>
    %cst_18 = arith.constant 1.280000e+02 : f32
    %23 = vector.broadcast %cst_18 : f32 to vector<8x1xf32>
    %24 = arith.divf %22, %23 : vector<8x1xf32>
    %25 = vector.broadcast %24 : vector<8x1xf32> to vector<8x128xf32>
    %26 = arith.subf %20, %25 : vector<8x128xf32>
    %27 = arith.mulf %26, %26 : vector<8x128xf32>
    %cst_19 = arith.constant dense<0.000000e+00> : vector<8xf32>
    %28 = vector.multi_reduction <add>, %27, %cst_19 [1] : vector<8x128xf32> to vector<8xf32>
    %29 = vector.shape_cast %28 : vector<8xf32> to vector<8x1xf32>
    %cst_20 = arith.constant 1.280000e+02 : f32
    %30 = vector.broadcast %cst_20 : f32 to vector<8x1xf32>
    %31 = arith.divf %29, %30 : vector<8x1xf32>
    %cst_21 = arith.constant 9.99999974E-6 : f32
    %32 = vector.broadcast %cst_21 : f32 to vector<8x1xf32>
    %33 = arith.addf %31, %32 : vector<8x1xf32>
    %34 = math.rsqrt %33 : vector<8x1xf32>
    %35 = vector.broadcast %34 : vector<8x1xf32> to vector<8x128xf32>
    %36 = arith.mulf %26, %35 : vector<8x128xf32>
    %c0_22 = arith.constant 0 : index
    %c0_23 = arith.constant 0 : index
    %37 = vector.load %arg7[%c0_22, %c0_23] : memref<1x128xf32, #tpu.memory_space<vmem>>, vector<1x128xf32>
    %38 = vector.broadcast %37 : vector<1x128xf32> to vector<8x128xf32>
    %39 = arith.mulf %36, %38 : vector<8x128xf32>
    %c0_24 = arith.constant 0 : index
    %c0_25 = arith.constant 0 : index
    %40 = vector.load %arg8[%c0_24, %c0_25] : memref<1x128xf32, #tpu.memory_space<vmem>>, vector<1x128xf32>
    %41 = vector.broadcast %40 : vector<1x128xf32> to vector<8x128xf32>
    %42 = arith.addf %39, %41 : vector<8x128xf32>
    %c0_26 = arith.constant 0 : index
    %c0_27 = arith.constant 0 : index
    %43 = vector.load %arg9[%c0_26, %c0_27] : memref<128x128xf32, #tpu.memory_space<vmem>>, vector<128x128xf32>
    %cst_28 = arith.constant dense<0.000000e+00> : vector<8x128xf32>
    %44 = tpu.matmul %42, %43, %cst_28 {dimension_numbers = #tpu.dot_dimension_numbers<[1], [0], [0], [1], [0, 0, 1, 1], [], []>} : vector<8x128xf32>, vector<128x128xf32>, vector<8x128xf32> -> vector<8x128xf32>
    %c0_29 = arith.constant 0 : index
    %c0_30 = arith.constant 0 : index
    %45 = vector.load %arg10[%c0_29, %c0_30] : memref<1x128xf32, #tpu.memory_space<vmem>>, vector<1x128xf32>
    %46 = vector.broadcast %45 : vector<1x128xf32> to vector<8x128xf32>
    %47 = arith.addf %44, %46 : vector<8x128xf32>
    %c0_31 = arith.constant 0 : index
    %c0_32 = arith.constant 0 : index
    %48 = vector.load %arg11[%c0_31, %c0_32] : memref<8x128xf32, #tpu.memory_space<vmem>>, vector<8x128xf32>
    tpu.vector_store %arg11[%c0_31, %c0_32], %47 {strides = array<i32>} : memref<8x128xf32, #tpu.memory_space<vmem>>, vector<8x128xf32>,
    return
  }
}

</mosaic_0001>

<llo_original>
// kernel: tpu_custom_call.1
$region0: #{tpu_custom_call.1}
  #allocation0 [shape = 'u32[]', space=smem, size = 0x4, offset = 0x4, fixed_abs, tag = 'smem constant byte address 0x4 - core index']
  #allocation1 [shape = 'u32[72,128]{1,0:T(1,128)}', space=vmem, size = 0x9000, scoped, tag = 'internal scratch']
  %s0 = inlined_call_operand.hbm [shape: f32[8,32], index: 0, kind: input, shape index: {}]
  %s1 = inlined_call_operand.hbm [shape: f32[32,128], index: 1, kind: input, shape index: {}]
  %s2 = inlined_call_operand.vmem [shape: f32[1,128], index: 2, kind: input, shape index: {}]
  %s3 = inlined_call_operand.hbm [shape: f32[128,128], index: 3, kind: input, shape index: {}]
  %s4 = inlined_call_operand.vmem [shape: f32[1,128], index: 4, kind: input, shape index: {}]
  %s5 = inlined_call_operand.hbm [shape: f32[128,128], index: 5, kind: input, shape index: {}]
  %s6 = inlined_call_operand.vmem [shape: f32[1,128], index: 6, kind: input, shape index: {}]
  %s7 = inlined_call_operand.vmem [shape: f32[1,128], index: 7, kind: input, shape index: {}]
  %s8 = inlined_call_operand.vmem [shape: f32[1,128], index: 8, kind: input, shape index: {}]
  %s9 = inlined_call_operand.hbm [shape: f32[128,128], index: 9, kind: input, shape index: {}]
  %s10 = inlined_call_operand.vmem [shape: f32[1,128], index: 10, kind: input, shape index: {}]
  %s11 = inlined_call_operand.hbm [shape: f32[8,128], index: 11, kind: output, shape index: {}]
  %s12 = sld [smem:[#allocation0]]
  $region74: #{tpu_custom_call.1} parent=0
    _
  %s14 = ssub.s32 1, %s12
  %s15 = scalar_select 0, %s14, %s12
  $region1: #{tpu_custom_call.1} parent=0
    #allocation2 [shape = 'u8[4096]{0}', space=vmem, size = 0x1000, scoped, tag = 'input window, operand 0, single buffered']
    #allocation3 [shape = 's32[1]{0}', space=sflag, size = 0x4, scoped, tag = 'scoped memory for tpu_custom_call.1']
    #allocation4 [shape = 's32[1]{0}', space=sflag, size = 0x4, scoped, tag = 'scoped memory for tpu_custom_call.1']
    #allocation5 [shape = 'u8[16384]{0}', space=vmem, size = 0x4000, scoped, tag = 'input window, operand 1, single buffered']
    #allocation6 [shape = 's32[1]{0}', space=sflag, size = 0x4, scoped, tag = 'scoped memory for tpu_custom_call.1']
    #allocation7 [shape = 'u8[65536]{0}', space=vmem, size = 0x10000, scoped, tag = 'input window, operand 3, single buffered']
    #allocation8 [shape = 'u8[65536]{0}', space=vmem, size = 0x10000, scoped, tag = 'input window, operand 5, single buffered']
    #allocation9 [shape = 's32[1]{0}', space=sflag, size = 0x4, scoped, tag = 'scoped memory for tpu_custom_call.1']
    #allocation10 [shape = 'u8[65536]{0}', space=vmem, size = 0x10000, scoped, tag = 'input window, operand 9, single buffered']
    #allocation11 [shape = 'u8[4096]{0}', space=vmem, size = 0x1000, scoped, tag = 'output window, operand 0, single buffered']
    %16 = vsyncpa [#allocation3], 0
    %17 = vsyncpa [#allocation6], 0
    %18 = vsyncpa [#allocation9], 0
    %19 = vsyncpa [#allocation4], 0
    // Predicated region
    $region2: #{tpu_custom_call.1} parent=1 // pred_check
      _
    $region3: #{tpu_custom_call.1} parent=1 // pred_check_branch
      %21 = sbr.rel (0) target = $region5
    $region4: #{tpu_custom_call.1} parent=1 // pred_region
      %23 = vsyncadd [#allocation3], 0
      %s25 = sshll.u32 %s0, 4
      %s26 = int_to_ptr.hbm [resolvable:$true] %s25
      %s27 = sshll.u32 [#allocation2], 4
      %s28 = int_to_ptr.vmem [resolvable:$true] %s27
      %30 = dma.hbm_to_vmem [thread:$0]  %s26, 128, %s28, [#allocation3]
    $region5: #{tpu_custom_call.1} parent=1 // pred_fallthru
      _
    // Predicated region
    $region6: #{tpu_custom_call.1} parent=1 // pred_check
      _
    $region7: #{tpu_custom_call.1} parent=1 // pred_check_branch
      %32 = sbr.rel (0) target = $region9
    $region8: #{tpu_custom_call.1} parent=1 // pred_region
      %34 = vsyncadd [#allocation6], 0
      %s35 = sshll.u32 %s1, 4
      %s36 = int_to_ptr.hbm [resolvable:$true] %s35
      %s37 = sshll.u32 [#allocation5], 4
      %s38 = int_to_ptr.vmem [resolvable:$true] %s37
      %43 = dma.hbm_to_vmem [thread:$0]  %s36, 512, %s38, [#allocation6], 128, 128, 8
    $region9: #{tpu_custom_call.1} parent=1 // pred_fallthru
      _
    // Predicated region
    $region10: #{tpu_custom_call.1} parent=1 // pred_check
      _
    $region11: #{tpu_custom_call.1} parent=1 // pred_check_branch
      %45 = sbr.rel (0) target = $region13
    $region12: #{tpu_custom_call.1} parent=1 // pred_region
      _
    $region13: #{tpu_custom_call.1} parent=1 // pred_fallthru
      _
    // Predicated region
    $region14: #{tpu_custom_call.1} parent=1 // pred_check
      _
    $region15: #{tpu_custom_call.1} parent=1 // pred_check_branch
      %47 = sbr.rel (0) target = $region17
    $region16: #{tpu_custom_call.1} parent=1 // pred_region
      %49 = vsyncadd [#allocation6], 0
      %s50 = sshll.u32 %s3, 4
      %s51 = int_to_ptr.hbm [resolvable:$true] %s50
      %s52 = sshll.u32 [#allocation7], 4
      %s53 = int_to_ptr.vmem [resolvable:$true] %s52
      %58 = dma.hbm_to_vmem [thread:$0]  %s51, 2048, %s53, [#allocation6], 128, 128, 8
    $region17: #{tpu_custom_call.1} parent=1 // pred_fallthru
      _
    // Predicated region
    $region18: #{tpu_custom_call.1} parent=1 // pred_check
      _
    $region19: #{tpu_custom_call.1} parent=1 // pred_check_branch
      %60 = sbr.rel (0) target = $region21
    $region20: #{tpu_custom_call.1} parent=1 // pred_region
      _
    $region21: #{tpu_custom_call.1} parent=1 // pred_fallthru
      _
    // Predicated region
    $region22: #{tpu_custom_call.1} parent=1 // pred_check
      _
    $region23: #{tpu_custom_call.1} parent=1 // pred_check_branch
      %62 = sbr.rel (0) target = $region25
    $region24: #{tpu_custom_call.1} parent=1 // pred_region
      %64 = vsyncadd [#allocation9], 0
      %s65 = sshll.u32 %s5, 4
      %s66 = int_to_ptr.hbm [resolvable:$true] %s65
      %s67 = sshll.u32 [#allocation8], 4
      %s68 = int_to_ptr.vmem [resolvable:$true] %s67
      %73 = dma.hbm_to_vmem [thread:$0]  %s66, 2048, %s68, [#allocation9], 128, 128, 8
    $region25: #{tpu_custom_call.1} parent=1 // pred_fallthru
      _
    // Predicated region
    $region26: #{tpu_custom_call.1} parent=1 // pred_check
      _
    $region27: #{tpu_custom_call.1} parent=1 // pred_check_branch
      %75 = sbr.rel (0) target = $region29
    $region28: #{tpu_custom_call.1} parent=1 // pred_region
      _
    $region29: #{tpu_custom_call.1} parent=1 // pred_fallthru
      _
    // Predicated region
    $region30: #{tpu_custom_call.1} parent=1 // pred_check
      _
    $region31: #{tpu_custom_call.1} parent=1 // pred_check_branch
      %77 = sbr.rel (0) target = $region33
    $region32: #{tpu_custom_call.1} parent=1 // pred_region
      _
    $region33: #{tpu_custom_call.1} parent=1 // pred_fallthru
      _
    // Predicated region
    $region34: #{tpu_custom_call.1} parent=1 // pred_check
      _
    $region35: #{tpu_custom_call.1} parent=1 // pred_check_branch
      %79 = sbr.rel (0) target = $region37
    $region36: #{tpu_custom_call.1} parent=1 // pred_region
      _
    $region37: #{tpu_custom_call.1} parent=1 // pred_fallthru
      _
    // Predicated region
    $region38: #{tpu_custom_call.1} parent=1 // pred_check
      _
    $region39: #{tpu_custom_call.1} parent=1 // pred_check_branch
      %81 = sbr.rel (0) target = $region41
    $region40: #{tpu_custom_call.1} parent=1 // pred_region
      %83 = vsyncadd [#allocation9], 0
      %s84 = sshll.u32 %s9, 4
      %s85 = int_to_ptr.hbm [resolvable:$true] %s84
      %s86 = sshll.u32 [#allocation10], 4
      %s87 = int_to_ptr.vmem [resolvable:$true] %s86
      %92 = dma.hbm_to_vmem [thread:$0]  %s85, 2048, %s87, [#allocation9], 128, 128, 8
    $region41: #{tpu_custom_call.1} parent=1 // pred_fallthru
      _
    // Predicated region
    $region42: #{tpu_custom_call.1} parent=1 // pred_check
      _
    $region43: #{tpu_custom_call.1} parent=1 // pred_check_branch
      %94 = sbr.rel (0) target = $region45
    $region44: #{tpu_custom_call.1} parent=1 // pred_region
      _
    $region45: #{tpu_custom_call.1} parent=1 // pred_fallthru
      _
    // Predicated region
    $region46: #{tpu_custom_call.1} parent=1 // pred_check
      _
    $region47: #{tpu_custom_call.1} parent=1 // pred_check_branch
      %96 = sbr.rel (0) target = $region49
    $region48: #{tpu_custom_call.1} parent=1 // pred_region
      %98 = dma.done [#allocation3], 128
    $region49: #{tpu_custom_call.1} parent=1 // pred_fallthru
      _
    // Predicated region
    $region50: #{tpu_custom_call.1} parent=1 // pred_check
      _
    $region51: #{tpu_custom_call.1} parent=1 // pred_check_branch
      %100 = sbr.rel (0) target = $region53
    $region52: #{tpu_custom_call.1} parent=1 // pred_region
      %102 = dma.done [#allocation6], 512
    $region53: #{tpu_custom_call.1} parent=1 // pred_fallthru
      _
    // Predicated region
    $region54: #{tpu_custom_call.1} parent=1 // pred_check
      _
    $region55: #{tpu_custom_call.1} parent=1 // pred_check_branch
      %104 = sbr.rel (0) target = $region57
    $region56: #{tpu_custom_call.1} parent=1 // pred_region
      %106 = dma.done [#allocation6], 2048
    $region57: #{tpu_custom_call.1} parent=1 // pred_fallthru
      _
    // Predicated region
    $region58: #{tpu_custom_call.1} parent=1 // pred_check
      _
    $region59: #{tpu_custom_call.1} parent=1 // pred_check_branch
      %108 = sbr.rel (0) target = $region61
    $region60: #{tpu_custom_call.1} parent=1 // pred_region
      %110 = dma.done [#allocation9], 2048
    $region61: #{tpu_custom_call.1} parent=1 // pred_fallthru
      _
    // Predicated region
    $region62: #{tpu_custom_call.1} parent=1 // pred_check
      _
    $region63: #{tpu_custom_call.1} parent=1 // pred_check_branch
      %112 = sbr.rel (0) target = $region65
    $region64: #{tpu_custom_call.1} parent=1 // pred_region
      %114 = dma.done [#allocation9], 2048
    $region65: #{tpu_custom_call.1} parent=1 // pred_fallthru
      _
    %v115 = vld [vmem:[#allocation2] sm:$0xff]
    %v116 = vld [vmem:[#allocation5] sm:$0xff]
    %v117 = vld [vmem:[#allocation5 + $0x8] sm:$0xff]
    %v118 = vld [vmem:[#allocation5 + $0x10] sm:$0xff]
    %v119 = vld [vmem:[#allocation5 + $0x18] sm:$0xff]
    %v120 = vld [vmem:[%s2] sm:$0x1]
    %v122 = vperm.slane %v120, 0
    %vm124 = vcmask 261120
    %v126 = vsel %vm124, %v115, 0
    %128 = vmatpush.msra.mxu0 0.0
    %129 = vmatpush.msra.mxu0 0.0
    %130 = vmatpush.msra.mxu0 0.0
    %131 = vmatpush.msra.mxu0 0.0
    %132 = vmatpush.msra.mxu0 0.0
    %133 = vmatpush.msra.mxu0 0.0
    %134 = vmatpush.msra.mxu0 0.0
    %135 = vmatpush.msra.mxu0 0.0
    %136 = vmatpush.msra.mxu0 0.0
    %137 = vmatpush.msra.mxu0 0.0
    %138 = vmatpush.msra.mxu0 0.0
    %139 = vmatpush.msra.mxu0 0.0
    %140 = vmatpush.msra.mxu0 %v119
    %141 = vmatpush.msra.mxu0 %v118
    %142 = vmatpush.msra.mxu0 %v117
    %143 = vmatpush.msra.mxu0 %v116
    %144 = vmatmul.f32.gmra.mxu0 %v126
    %v145 = vpop.f32.mrf.mxu0
    %v146 = vadd.f32 %v122, %v145
    %147 = vdwg.mxu0
    %v148 = vld [vmem:[#allocation7] sm:$0xff]
    %v149 = vld [vmem:[#allocation7 + $0x8] sm:$0xff]
    %v150 = vld [vmem:[#allocation7 + $0x10] sm:$0xff]
    %v151 = vld [vmem:[#allocation7 + $0x18] sm:$0xff]
    %v152 = vld [vmem:[#allocation7 + $0x20] sm:$0xff]
    %v153 = vld [vmem:[#allocation7 + $0x28] sm:$0xff]
    %v154 = vld [vmem:[#allocation7 + $0x30] sm:$0xff]
    %v155 = vld [vmem:[#allocation7 + $0x38] sm:$0xff]
    %v156 = vld [vmem:[#allocation7 + $0x40] sm:$0xff]
    %v157 = vld [vmem:[#allocation7 + $0x48] sm:$0xff]
    %v158 = vld [vmem:[#allocation7 + $0x50] sm:$0xff]
    %v159 = vld [vmem:[#allocation7 + $0x58] sm:$0xff]
    %v160 = vld [vmem:[#allocation7 + $0x60] sm:$0xff]
    %v161 = vld [vmem:[#allocation7 + $0x68] sm:$0xff]
    %v162 = vld [vmem:[#allocation7 + $0x70] sm:$0xff]
    %v163 = vld [vmem:[#allocation7 + $0x78] sm:$0xff]
    %v164 = vld [vmem:[%s4] sm:$0x1]
    %v166 = vperm.slane %v164, 0
    %168 = vmatpush.msra.mxu0 %v163
    %169 = vmatpush.msra.mxu0 %v162
    %170 = vmatpush.msra.mxu0 %v161
    %171 = vmatpush.msra.mxu0 %v160
    %172 = vmatpush.msra.mxu0 %v159
    %173 = vmatpush.msra.mxu0 %v158
    %174 = vmatpush.msra.mxu0 %v157
    %175 = vmatpush.msra.mxu0 %v156
    %176 = vmatpush.msra.mxu0 %v155
    %177 = vmatpush.msra.mxu0 %v154
    %178 = vmatpush.msra.mxu0 %v153
    %179 = vmatpush.msra.mxu0 %v152
    %180 = vmatpush.msra.mxu0 %v151
    %181 = vmatpush.msra.mxu0 %v150
    %182 = vmatpush.msra.mxu0 %v149
    %183 = vmatpush.msra.mxu0 %v148
    %184 = vmatmul.f32.gmra.mxu0 %v146
    %v185 = vpop.f32.mrf.mxu0
    %v186 = vadd.f32 %v166, %v185
    %187 = vdwg.mxu0
    %v188 = vmax.f32 %v186, 0.0
    %v189 = vld [vmem:[#allocation8] sm:$0xff]
    %v190 = vld [vmem:[#allocation8 + $0x8] sm:$0xff]
    %v191 = vld [vmem:[#allocation8 + $0x10] sm:$0xff]
    %v192 = vld [vmem:[#allocation8 + $0x18] sm:$0xff]
    %v193 = vld [vmem:[#allocation8 + $0x20] sm:$0xff]
    %v194 = vld [vmem:[#allocation8 + $0x28] sm:$0xff]
    %v195 = vld [vmem:[#allocation8 + $0x30] sm:$0xff]
    %v196 = vld [vmem:[#allocation8 + $0x38] sm:$0xff]
    %v197 = vld [vmem:[#allocation8 + $0x40] sm:$0xff]
    %v198 = vld [vmem:[#allocation8 + $0x48] sm:$0xff]
    %v199 = vld [vmem:[#allocation8 + $0x50] sm:$0xff]
    %v200 = vld [vmem:[#allocation8 + $0x58] sm:$0xff]
    %v201 = vld [vmem:[#allocation8 + $0x60] sm:$0xff]
    %v202 = vld [vmem:[#allocation8 + $0x68] sm:$0xff]
    %v203 = vld [vmem:[#allocation8 + $0x70] sm:$0xff]
    %v204 = vld [vmem:[#allocation8 + $0x78] sm:$0xff]
    %v205 = vld [vmem:[%s6] sm:$0x1]
    %v207 = vperm.slane %v205, 0
    %209 = vmatpush.msra.mxu0 %v204
    %210 = vmatpush.msra.mxu0 %v203
    %211 = vmatpush.msra.mxu0 %v202
    %212 = vmatpush.msra.mxu0 %v201
    %213 = vmatpush.msra.mxu0 %v200
    %214 = vmatpush.msra.mxu0 %v199
    %215 = vmatpush.msra.mxu0 %v198
    %216 = vmatpush.msra.mxu0 %v197
    %217 = vmatpush.msra.mxu0 %v196
    %218 = vmatpush.msra.mxu0 %v195
    %219 = vmatpush.msra.mxu0 %v194
    %220 = vmatpush.msra.mxu0 %v193
    %221 = vmatpush.msra.mxu0 %v192
    %222 = vmatpush.msra.mxu0 %v191
    %223 = vmatpush.msra.mxu0 %v190
    %224 = vmatpush.msra.mxu0 %v189
    %225 = vmatmul.f32.gmra.mxu0 %v188
    %v226 = vpop.f32.mrf.mxu0
    %v227 = vadd.f32 %v207, %v226
    %228 = vdwg.mxu0
    %v229 = vmax.f32 %v227, 0.0
    %v230 = vadd.f32 %v146, %v229
    %231 = vadd.xlane.f32.xlu0 %v230
    %v232 = vpop.xlane.xlu0 %231
    %v233 = vrcp.pop 128.0
    %v234 = vmul.f32 128.0, %v233
    %v235 = vsub.f32 1.0, %v234
    %v236 = vmul.f32 %v233, %v235
    %v237 = vadd.f32 %v233, %v236
    %vm238 = vweird.f32 %v233
    %v239 = vsel %vm238, %v233, %v237
    %v240 = vmul.f32 %v232, %v239
    %v241 = vsub.f32 %v230, %v240
    %v242 = vmul.f32 %v241, %v241
    %243 = vadd.xlane.f32.xlu0 %v242
    %v244 = vpop.xlane.xlu0 %243
    %v245 = vmul.f32 %v244, %v239
    %v246 = vadd.f32 %v245, 1e-05
    %v247 = vrsqrt.pop %v246
    %v248 = vmul.f32 %v247, %v246
    %v249 = vmul.f32 %v248, %v247
    %v250 = vmul.f32 0.5, %v249
    %v251 = vsub.f32 1.5, %v250
    %v252 = vmul.f32 %v247, %v251
    %vm253 = vweird.f32 %v246
    %vm254 = vweird.f32 %v247
    %vm255 = vmor %vm253, %vm254
    %v256 = vsel %vm255, %v247, %v252
    %v257 = vmul.f32 %v241, %v256
    %v258 = vld [vmem:[%s7] sm:$0x1]
    %v260 = vperm.slane %v258, 0
    %v262 = vmul.f32 %v257, %v260
    %v263 = vld [vmem:[%s8] sm:$0x1]
    %v265 = vperm.slane %v263, 0
    %v267 = vadd.f32 %v262, %v265
    %v268 = vld [vmem:[#allocation10] sm:$0xff]
    %v269 = vld [vmem:[#allocation10 + $0x8] sm:$0xff]
    %v270 = vld [vmem:[#allocation10 + $0x10] sm:$0xff]
    %v271 = vld [vmem:[#allocation10 + $0x18] sm:$0xff]
    %v272 = vld [vmem:[#allocation10 + $0x20] sm:$0xff]
    %v273 = vld [vmem:[#allocation10 + $0x28] sm:$0xff]
    %v274 = vld [vmem:[#allocation10 + $0x30] sm:$0xff]
    %v275 = vld [vmem:[#allocation10 + $0x38] sm:$0xff]
    %v276 = vld [vmem:[#allocation10 + $0x40] sm:$0xff]
    %v277 = vld [vmem:[#allocation10 + $0x48] sm:$0xff]
    %v278 = vld [vmem:[#allocation10 + $0x50] sm:$0xff]
    %v279 = vld [vmem:[#allocation10 + $0x58] sm:$0xff]
    %v280 = vld [vmem:[#allocation10 + $0x60] sm:$0xff]
    %v281 = vld [vmem:[#allocation10 + $0x68] sm:$0xff]
    %v282 = vld [vmem:[#allocation10 + $0x70] sm:$0xff]
    %v283 = vld [vmem:[#allocation10 + $0x78] sm:$0xff]
    %v284 = vld [vmem:[%s10] sm:$0x1]
    %v286 = vperm.slane %v284, 0
    %288 = vmatpush.msra.mxu0 %v283
    %289 = vmatpush.msra.mxu0 %v282
    %290 = vmatpush.msra.mxu0 %v281
    %291 = vmatpush.msra.mxu0 %v280
    %292 = vmatpush.msra.mxu0 %v279
    %293 = vmatpush.msra.mxu0 %v278
    %294 = vmatpush.msra.mxu0 %v277
    %295 = vmatpush.msra.mxu0 %v276
    %296 = vmatpush.msra.mxu0 %v275
    %297 = vmatpush.msra.mxu0 %v274
    %298 = vmatpush.msra.mxu0 %v273
    %299 = vmatpush.msra.mxu0 %v272
    %300 = vmatpush.msra.mxu0 %v271
    %301 = vmatpush.msra.mxu0 %v270
    %302 = vmatpush.msra.mxu0 %v269
    %303 = vmatpush.msra.mxu0 %v268
    %304 = vmatmul.f32.gmra.mxu0 %v267
    %v305 = vpop.f32.mrf.mxu0
    %v306 = vadd.f32 %v286, %v305
    %307 = vdwg.mxu0
    %308 = vst [vmem:[#allocation11] sm:$0xff] %v306
    // Predicated region
    $region66: #{tpu_custom_call.1} parent=1 // pred_check
      _
    $region67: #{tpu_custom_call.1} parent=1 // pred_check_branch
      %310 = sbr.rel (0) target = $region69
    $region68: #{tpu_custom_call.1} parent=1 // pred_region
      %312 = vsyncadd [#allocation4], 0
      %s314 = sshll.u32 [#allocation11], 4
      %s315 = int_to_ptr.vmem [resolvable:$true] %s314
      %s316 = sshll.u32 %s11, 4
      %s317 = int_to_ptr.hbm [resolvable:$true] %s316
      %319 = dma.vmem_to_hbm [thread:$0]  %s315, 128, %s317, [#allocation4]
    $region69: #{tpu_custom_call.1} parent=1 // pred_fallthru
      _
    // Predicated region
    $region70: #{tpu_custom_call.1} parent=1 // pred_check
      _
    $region71: #{tpu_custom_call.1} parent=1 // pred_check_branch
      %321 = sbr.rel (0) target = $region73
    $region72: #{tpu_custom_call.1} parent=1 // pred_region
      %323 = dma.done [#allocation4], 128
    $region73: #{tpu_custom_call.1} parent=1 // pred_fallthru
      _
    %324 = vsyncpa [#allocation3], 1
    %325 = vsyncpa [#allocation6], 1
    %326 = vsyncpa [#allocation9], 1
    %327 = vsyncpa [#allocation4], 1

</llo_original>
